<compile_context>
chip_gen: v5e
topology: v5e:2x2
jax: 0.10.0
libtpu: 0.0.40
codegen_flags: <defaults>
</compile_context>

<pallas_src>
import math

import jax
import jax.numpy as jnp
from jax.experimental import pallas as pl
from jax.experimental.pallas import tpu as pltpu


_ADJ_SLAB_TARGET_BYTES = 12 * 1024 * 1024   # per-buffer adj slab HBM-BW knee
_VMEM_HEADROOM_BYTES = 4 * 1024 * 1024      # compiler internal scratch headroom


# ---------------------------------------------------------------------------
# VMEM sizing helpers
# ---------------------------------------------------------------------------
def _vmem_limit_bytes():
    """Generation-aware VMEM limit: 85% of physical per-core VMEM
    (~54 MiB on v7x's 64 MiB, ~109 MiB on v5e/v6e's 128 MiB)."""
    cap = 64 * 1024 * 1024
    try:
        info = pltpu.get_tpu_info()
        cap = int(getattr(info, "vmem_capacity_bytes", cap)) or cap
    except Exception:
        pass
    return max(32 * 1024 * 1024, int(cap * 0.85))


def _round_rows(tm, n):
    tm = int(tm)
    if tm >= n:
        return int(n)
    return max(8, (tm // 8) * 8)


def _pick_block_m(n, adj_row_bytes, per_row_bytes, fixed_bytes, vmem_limit):
    """Largest row tile whose total residency (adj double-buffer + per-row
    output/d_inv buffers + fixed resident buffers) fits the VMEM limit, with
    the adj slab capped at the HBM-bandwidth knee."""
    avail = vmem_limit - fixed_bytes - _VMEM_HEADROOM_BYTES
    tm = avail // per_row_bytes if avail > 0 else 8
    knee = _ADJ_SLAB_TARGET_BYTES // max(adj_row_bytes, 1)
    tm = min(int(tm), int(knee))
    return _round_rows(max(tm, 8), n)


# ---------------------------------------------------------------------------
# Prologue: fused degree -> D^{-1/2} and adjacency downcast (single f32 read)
# ---------------------------------------------------------------------------
def _degree_cast_kernel(adj_ref, dinv_ref, adjc_ref):
    a = adj_ref[0]                                              # (TM, N) f32
    deg = jnp.sum(a.astype(jnp.float32), axis=-1, keepdims=True)
    dinv_ref[0] = jax.lax.rsqrt(deg + 1e-6)                     # (TM, 1) f32
    adjc_ref[0] = a.astype(adjc_ref.dtype)                      # (TM, N) cdt


def _degree_and_cast(adj, cdt, vmem_limit):
    B, N, _ = adj.shape
    in_item = jnp.dtype(adj.dtype).itemsize
    out_item = jnp.dtype(cdt).itemsize
    per_row = 2 * N * (in_item + out_item) + 2 * 4
    tm = _pick_block_m(N, N * in_item, per_row, 0, vmem_limit)
    grid = (B, pl.cdiv(N, tm))
    return pl.pallas_call(
        _degree_cast_kernel,
        out_shape=(jax.ShapeDtypeStruct((B, N, 1), jnp.float32),
                   jax.ShapeDtypeStruct((B, N, N), cdt)),
        grid_spec=pltpu.PrefetchScalarGridSpec(
            num_scalar_prefetch=0,
            grid=grid,
            in_specs=[pl.BlockSpec((1, tm, N), lambda b, m: (b, m, 0))],
            out_specs=[pl.BlockSpec((1, tm, 1), lambda b, m: (b, m, 0)),
                       pl.BlockSpec((1, tm, N), lambda b, m: (b, m, 0))],
        ),
        compiler_params=pltpu.CompilerParams(
            dimension_semantics=("parallel", "parallel"),
            vmem_limit_bytes=vmem_limit,
        ),
    )(adj)


# ---------------------------------------------------------------------------
# Main GCN kernels
# ---------------------------------------------------------------------------
def _make_gcn_kernel_xw(activation):
    """XW precomputed in the wrapper.  Refs: adj (1,TM,N), xw (1,N,Fp),
    d_inv (1,TM,1), bias (1,Fp), out (1,TM,Fp)."""
    def kernel(adj_ref, xw_ref, dinv_ref, b_ref, o_ref):
        agg = jnp.dot(adj_ref[0], xw_ref[0],
                      preferred_element_type=jnp.float32)       # (TM, Fp) f32
        z = dinv_ref[0] * agg + b_ref[...]                      # row scale + bias
        if activation is not None:
            z = activation(z)
        o_ref[0] = z.astype(o_ref.dtype)
    return kernel


def _make_gcn_kernel_2mm(activation):
    """Two in-kernel matmuls (F_out > F_in).  Refs: adj (1,TM,N),
    x_scaled (1,N,Fin), d_inv (1,TM,1), weight (Fin,Fp), bias (1,Fp),
    out (1,TM,Fp)."""
    def kernel(adj_ref, xs_ref, dinv_ref, w_ref, b_ref, o_ref):
        agg = jnp.dot(adj_ref[0], xs_ref[0],
                      preferred_element_type=jnp.float32)       # (TM, Fin) f32
        agg = dinv_ref[0] * agg                                 # row scale
        z = jnp.dot(agg.astype(w_ref.dtype), w_ref[...],
                    preferred_element_type=jnp.float32) + b_ref[...]
        if activation is not None:
            z = activation(z)
        o_ref[0] = z.astype(o_ref.dtype)
    return kernel


# ---------------------------------------------------------------------------
# Wrapper
# ---------------------------------------------------------------------------
def gcn_forward(x, adj, weight, bias=None, *, activation=None,
                compute_dtype=jnp.bfloat16, block_m=None):
    """GCN layer forward.

    x: [B, N, F_in], adj: [B, N, N], weight: [F_in, F_out], bias: [F_out]|None.
    compute_dtype: dtype of the adjacency / matmul operands inside the kernel
    (default bfloat16: halves the dominant N^2 HBM stream; accumulation and
    d_inv stay float32).  Pass jnp.float32 for exact parity with the module.
    """
    B, N, F_in = x.shape
    F_out = weight.shape[1]
    out_dtype = x.dtype
    cdt = jnp.dtype(compute_dtype) if compute_dtype is not None else jnp.dtype(x.dtype)
    out_itemsize = jnp.dtype(out_dtype).itemsize

    vmem_limit = _vmem_limit_bytes()

    # --- Degree / D^{-1/2} (always f32, from the ORIGINAL adjacency) ---------
    if cdt != jnp.dtype(adj.dtype):
        # Fused single-pass prologue: read f32 adj once -> d_inv + downcast adj.
        d_inv3, adj_c = _degree_and_cast(adj, cdt, vmem_limit)  # [B,N,1], [B,N,N]
    else:
        degree = jnp.sum(adj.astype(jnp.float32), axis=-1, keepdims=True)
        d_inv3 = jax.lax.rsqrt(degree + 1e-6)                   # [B, N, 1] f32
        adj_c = adj

    # --- Lane-dense F_out padding (weight / bias / output) -------------------
    F_pad = max(128, ((F_out + 127) // 128) * 128)
    w_pad = weight.astype(jnp.float32)
    if F_pad != F_out:
        w_pad = jnp.pad(w_pad, ((0, 0), (0, F_pad - F_out)))
    if bias is None:
        bias2d = jnp.zeros((1, F_pad), jnp.float32)
    else:
        bias2d = jnp.pad(bias.astype(jnp.float32), (0, F_pad - F_out)).reshape(1, F_pad)

    # --- Fold the column scaling D^{-1/2} into x once (exact f32) ------------
    x_scaled = x.astype(jnp.float32) * d_inv3                   # [B, N, F_in] f32

    # Cheaper ordering: the dominant O(N^2) matmul gets width min(F_in, F_out).
    xw_first = F_out <= F_in

    if xw_first:
        # Precompute XW in the wrapper (one cheap XLA matmul): drops the
        # (N, F_in) residency, the weight block and the cross-tile scratch.
        xw = jnp.einsum("bnf,fo->bno", x_scaled, w_pad).astype(cdt)   # [B,N,Fp]
        fixed = 2 * N * F_pad * cdt.itemsize + 2 * F_pad * 4
    else:
        xs = x_scaled.astype(cdt)
        w_c = w_pad.astype(cdt)
        fixed = (2 * N * F_in * cdt.itemsize
                 + 2 * F_in * F_pad * cdt.itemsize
                 + 2 * F_pad * 4)

    # Per-row residency: adj double buffer + output double buffer + d_inv.
    per_row = 2 * N * cdt.itemsize + 2 * F_pad * out_itemsize + 2 * 4
    if block_m is not None:
        tm = _round_rows(int(block_m), N)
    else:
        tm = _pick_block_m(N, N * cdt.itemsize, per_row, fixed, vmem_limit)
    grid = (B, pl.cdiv(N, tm))

    if xw_first:
        kernel = _make_gcn_kernel_xw(activation)
        in_specs = [
            pl.BlockSpec((1, tm, N), lambda b, m: (b, m, 0)),       # adj row slab
            pl.BlockSpec((1, N, F_pad), lambda b, m: (b, 0, 0)),    # XW (per batch)
            pl.BlockSpec((1, tm, 1), lambda b, m: (b, m, 0)),       # row d_inv
            pl.BlockSpec((1, F_pad), lambda b, m: (0, 0)),          # bias (shared)
        ]
        operands = (adj_c, xw, d_inv3, bias2d)
    else:
        kernel = _make_gcn_kernel_2mm(activation)
        in_specs = [
            pl.BlockSpec((1, tm, N), lambda b, m: (b, m, 0)),       # adj row slab
            pl.BlockSpec((1, N, F_in), lambda b, m: (b, 0, 0)),     # col-scaled x
            pl.BlockSpec((1, tm, 1), lambda b, m: (b, m, 0)),       # row d_inv
            pl.BlockSpec((F_in, F_pad), lambda b, m: (0, 0)),       # weight (shared)
            pl.BlockSpec((1, F_pad), lambda b, m: (0, 0)),          # bias (shared)
        ]
        operands = (adj_c, xs, d_inv3, w_c, bias2d)

    out_padded = pl.pallas_call(
        kernel,
        out_shape=jax.ShapeDtypeStruct((B, N, F_pad), out_dtype),
        grid_spec=pltpu.PrefetchScalarGridSpec(
            num_scalar_prefetch=0,
            grid=grid,
            in_specs=in_specs,
            out_specs=pl.BlockSpec((1, tm, F_pad), lambda b, m: (b, m, 0)),
        ),
        compiler_params=pltpu.CompilerParams(
            # No cross-tile scratch in either path -> both axes megacore-parallel
            # (matters on v7x's 2 TCs with small batch).
            dimension_semantics=("parallel", "parallel"),
            vmem_limit_bytes=vmem_limit,
        ),
    )(*operands)

    if F_pad != F_out:
        return out_padded[..., :F_out]
    return out_padded


# ---------------------------------------------------------------------------
# Reference + test harness
# ---------------------------------------------------------------------------
def _reference(x, adj, weight, bias):
    degree = jnp.sum(adj, axis=-1)
    d_inv = jnp.power(degree + 1e-6, -0.5)
    d = jax.vmap(jnp.diag)(d_inv)
    adj_norm = jnp.matmul(jnp.matmul(d, adj), d)
    z = jnp.matmul(adj_norm, x)
    z = jnp.matmul(z, weight)
    return z + bias


def _make_inputs(key, B, N, F_in, F_out):
    kx, kadj, kw, kb = jax.random.split(key, 4)
    x = jax.random.normal(kx, (B, N, F_in), dtype=jnp.float32)
    a = jax.random.uniform(kadj, (B, N, N), dtype=jnp.float32)
    adj = (a + jnp.swapaxes(a, -1, -2)) * 0.5 + jnp.eye(N, dtype=jnp.float32)
    # Match reset_parameters(): xavier_uniform_ weight; bias randomized here to
    # actually exercise the bias-add path.
    limit = math.sqrt(6.0 / (F_in + F_out))
    weight = jax.random.uniform(kw, (F_in, F_out), dtype=jnp.float32,
                                minval=-limit, maxval=limit)
    bias = 0.1 * jax.random.normal(kb, (F_out,), dtype=jnp.float32)
    return x, adj, weight, bias


if __name__ == "__main__":
    key = jax.random.PRNGKey(0)

    configs = [
        # (B, N, F_in, F_out, block_m)
        (2, 16, 8, 16, None),   # F_out > F_in: two-matmul path
        (2, 16, 16, 8, None),   # F_out <= F_in: wrapper-precomputed XW path
        (2, 32, 8, 16, 8),      # row-tiled (4 tiles/batch), two-matmul path
        (2, 32, 16, 8, 8),      # row-tiled, XW path
    ]
    keys = jax.random.split(key, len(configs))

    for cfg_key, (B, N, F_in, F_out, bm) in zip(keys, configs):
        x, adj, weight, bias = _make_inputs(cfg_key, B, N, F_in, F_out)
        ref = _reference(x, adj, weight, bias)

        # Exact f32 compute path: tight parity with the PyTorch module.
        out = jax.block_until_ready(
            gcn_forward(x, adj, weight, bias,
                        compute_dtype=jnp.float32, block_m=bm))
        assert out.shape == (B, N, F_out)
        assert jnp.allclose(out, ref, atol=5e-4, rtol=5e-4), (
            f"f32 mismatch vs reference for config {(B, N, F_in, F_out, bm)}")

        # Default path (bf16 adjacency, fused degree+cast prologue, f32 accum).
        out_bf = jax.block_until_ready(
            gcn_forward(x, adj, weight, bias, block_m=bm))
        assert out_bf.shape == (B, N, F_out)
        assert bool(jnp.all(jnp.isfinite(out_bf)))
        assert jnp.allclose(out_bf.astype(jnp.float32), ref,
                            atol=0.15, rtol=0.15), (
            f"bf16 mismatch vs reference for config {(B, N, F_in, F_out, bm)}")

    # Activation + no-bias sanity check (ReLU).
    B, N, F_in, F_out, bm = configs[1]
    x, adj, weight, bias = _make_inputs(keys[1], B, N, F_in, F_out)
    out_act = jax.block_until_ready(
        gcn_forward(x, adj, weight, None, activation=jax.nn.relu,
                    compute_dtype=jnp.float32, block_m=bm))
    ref_act = jax.nn.relu(_reference(x, adj, weight, jnp.zeros((F_out,), jnp.float32)))
    assert jnp.allclose(out_act, ref_act, atol=5e-4, rtol=5e-4), (
        "activation / no-bias path mismatch vs reference")

    print("KERNEL_OK")
</pallas_src>

<mosaic_0001>
module attributes {stable_mosaic.version = 11 : i64} {
  func.func @kernel(%arg0: i32, %arg1: i32, %arg2: memref<1x16x16xf32, #tpu.memory_space<vmem>>, %arg3: memref<1x16x8xf32, #tpu.memory_space<vmem>>, %arg4: memref<1x16x1xf32, #tpu.memory_space<vmem>>, %arg5: memref<8x128xf32, #tpu.memory_space<vmem>>, %arg6: memref<1x128xf32, #tpu.memory_space<vmem>>, %arg7: memref<1x16x128xf32, #tpu.memory_space<vmem>>) attributes {dimension_semantics = [#tpu.dimension_semantics<parallel>, #tpu.dimension_semantics<parallel>], iteration_bounds = array<i64: 2, 1>, scalar_prefetch = 0 : i64, scratch_operands = 0 : i64, tpu.core_type = #tpu.core_type<tc>, window_params = [{transform_indices = @transform_0, window_bounds = array<i64: 1, 16, 16>}, {transform_indices = @transform_1, window_bounds = array<i64: 1, 16, 8>}, {transform_indices = @transform_2, window_bounds = array<i64: 1, 16, 1>}, {pipeline_mode = #tpu.pipeline_mode<synchronous>, transform_indices = @transform_3, window_bounds = array<i64: 8, 128>}, {pipeline_mode = #tpu.pipeline_mode<synchronous>, transform_indices = @transform_4, window_bounds = array<i64: 1, 128>}, {transform_indices = @transform_5, window_bounds = array<i64: 1, 16, 128>}]} {
    %c0 = arith.constant 0 : index
    %c0_0 = arith.constant 0 : index
    %c0_1 = arith.constant 0 : index
    %0 = vector.load %arg2[%c0, %c0_0, %c0_1] : memref<1x16x16xf32, #tpu.memory_space<vmem>>, vector<1x16x16xf32>
    %1 = vector.shape_cast %0 : vector<1x16x16xf32> to vector<16x16xf32>
    %c0_2 = arith.constant 0 : index
    %c0_3 = arith.constant 0 : index
    %c0_4 = arith.constant 0 : index
    %2 = vector.load %arg3[%c0_2, %c0_3, %c0_4] : memref<1x16x8xf32, #tpu.memory_space<vmem>>, vector<1x16x8xf32>
    %3 = vector.shape_cast %2 : vector<1x16x8xf32> to vector<16x8xf32>
    %cst = arith.constant dense<0.000000e+00> : vector<16x8xf32>
    %4 = tpu.matmul %1, %3, %cst {dimension_numbers = #tpu.dot_dimension_numbers<[1], [0], [0], [1], [0, 0, 1, 1], [], []>} : vector<16x16xf32>, vector<16x8xf32>, vector<16x8xf32> -> vector<16x8xf32>
    %c0_5 = arith.constant 0 : index
    %c0_6 = arith.constant 0 : index
    %c0_7 = arith.constant 0 : index
    %5 = vector.load %arg4[%c0_5, %c0_6, %c0_7] : memref<1x16x1xf32, #tpu.memory_space<vmem>>, vector<1x16x1xf32>
    %6 = vector.shape_cast %5 : vector<1x16x1xf32> to vector<16x1xf32>
    %7 = vector.broadcast %6 : vector<16x1xf32> to vector<16x8xf32>
    %8 = arith.mulf %7, %4 : vector<16x8xf32>
    %c0_8 = arith.constant 0 : index
    %c0_9 = arith.constant 0 : index
    %9 = vector.load %arg5[%c0_8, %c0_9] : memref<8x128xf32, #tpu.memory_space<vmem>>, vector<8x128xf32>
    %cst_10 = arith.constant dense<0.000000e+00> : vector<16x128xf32>
    %10 = tpu.matmul %8, %9, %cst_10 {dimension_numbers = #tpu.dot_dimension_numbers<[1], [0], [0], [1], [0, 0, 1, 1], [], []>} : vector<16x8xf32>, vector<8x128xf32>, vector<16x128xf32> -> vector<16x128xf32>
    %c0_11 = arith.constant 0 : index
    %c0_12 = arith.constant 0 : index
    %11 = vector.load %arg6[%c0_11, %c0_12] : memref<1x128xf32, #tpu.memory_space<vmem>>, vector<1x128xf32>
    %12 = vector.broadcast %11 : vector<1x128xf32> to vector<16x128xf32>
    %13 = arith.addf %10, %12 : vector<16x128xf32>
    %c0_13 = arith.constant 0 : index
    %c0_14 = arith.constant 0 : index
    %c0_15 = arith.constant 0 : index
    %14 = vector.load %arg7[%c0_13, %c0_14, %c0_15] : memref<1x16x128xf32, #tpu.memory_space<vmem>>, vector<1x16x128xf32>
    %15 = vector.shape_cast %14 : vector<1x16x128xf32> to vector<16x128xf32>
    %16 = vector.shape_cast %13 : vector<16x128xf32> to vector<1x16x128xf32>
    tpu.vector_store %arg7[%c0_13, %c0_14, %c0_15], %16 {strides = array<i32>} : memref<1x16x128xf32, #tpu.memory_space<vmem>>, vector<1x16x128xf32>,
    return
  }
  func.func @transform_0(%arg0: i32, %arg1: i32) -> (i32, i32, i32) {
    %c0_i32 = arith.constant 0 : i32
    %c0_i32_0 = arith.constant 0 : i32
    return %arg0, %arg1, %c0_i32 : i32, i32, i32
  }
  func.func @transform_1(%arg0: i32, %arg1: i32) -> (i32, i32, i32) {
    %c0_i32 = arith.constant 0 : i32
    %c0_i32_0 = arith.constant 0 : i32
    %c0_i32_1 = arith.constant 0 : i32
    return %arg0, %c0_i32, %c0_i32_0 : i32, i32, i32
  }
  func.func @transform_2(%arg0: i32, %arg1: i32) -> (i32, i32, i32) {
    %c0_i32 = arith.constant 0 : i32
    %c0_i32_0 = arith.constant 0 : i32
    return %arg0, %arg1, %c0_i32 : i32, i32, i32
  }
  func.func @transform_3(%arg0: i32, %arg1: i32) -> (i32, i32) {
    %c0_i32 = arith.constant 0 : i32
    %c0_i32_0 = arith.constant 0 : i32
    %c0_i32_1 = arith.constant 0 : i32
    return %c0_i32, %c0_i32_0 : i32, i32
  }
  func.func @transform_4(%arg0: i32, %arg1: i32) -> (i32, i32) {
    %c0_i32 = arith.constant 0 : i32
    %c0_i32_0 = arith.constant 0 : i32
    %c0_i32_1 = arith.constant 0 : i32
    return %c0_i32, %c0_i32_0 : i32, i32
  }
  func.func @transform_5(%arg0: i32, %arg1: i32) -> (i32, i32, i32) {
    %c0_i32 = arith.constant 0 : i32
    %c0_i32_0 = arith.constant 0 : i32
    return %arg0, %arg1, %c0_i32 : i32, i32, i32
  }
}

</mosaic_0001>

<llo_original>
// kernel: tpu_custom_call.1
$region0: #{tpu_custom_call.1}
  #allocation0 [shape = 'u32[]', space=smem, size = 0x4, offset = 0x4, fixed_abs, tag = 'smem constant byte address 0x4 - core index']
  #allocation1 [shape = 'u32[72,128]{1,0:T(1,128)}', space=vmem, size = 0x9000, scoped, tag = 'internal scratch']
  %s0 = inlined_call_operand.vmem [shape: f32[2,16,16], index: 0, kind: input, shape index: {}]
  %s1 = inlined_call_operand.vmem [shape: f32[2,16,8], index: 1, kind: input, shape index: {}]
  %s2 = inlined_call_operand.vmem [shape: f32[2,16,1], index: 2, kind: input, shape index: {}]
  %s3 = inlined_call_operand.vmem [shape: f32[8,128], index: 3, kind: input, shape index: {}]
  %s4 = inlined_call_operand.vmem [shape: f32[1,128], index: 4, kind: input, shape index: {}]
  %s5 = inlined_call_operand.hbm [shape: f32[2,16,128], index: 5, kind: output, shape index: {}]
  %s6 = sld [smem:[#allocation0]]
  $region53: #{tpu_custom_call.1} parent=0
    _
  %s8 = ssub.s32 1, %s6
  %s9 = scalar_select 0, %s8, %s6
  $region1: #{tpu_custom_call.1} parent=0
    #allocation2 [shape = 'u8[16384]{0}', space=vmem, size = 0x4000, scoped, tag = 'output window, operand 0']
    #allocation3 [shape = 's32[2]{0}', space=sflag, size = 0x8, scoped, tag = 'scoped memory for tpu_custom_call.1']
    %10 = vsyncpa [#allocation3], 0
    %s11 = scalar_lea.sflag [#allocation3], 1
    %12 = vsyncpa %s11, 0
    loop: start=0, step=1, limit=4
    $region2: #{tpu_custom_call.1} parent=1 // loop_pre_header
      _
    $region3: #{tpu_custom_call.1} parent=1 // loop_header
      %s14 = sphi 0, %s18
      %p15 = scmp.ge.s32.totalorder %s14, 4
      %s21 = sphi 0, %s33
      %s22 = sphi 0, %s29
      %s23 = sphi 0, %s21
      %s24 = sphi 0, %s22
      %s25 = sphi 0, %s23
      %s26 = sphi 0, %s24
      %s38 = sphi 0, %s40
      %s41 = sphi 0, %s38
      %s42 = sphi 0, %s41
      %s58 = sphi 0, %s42
      %s64 = sphi 0, %s66
      %s67 = sphi 0, %s64
      %s68 = sphi 0, %s67
      %s84 = sphi 0, %s68
      %s92 = sphi 0, %s94
      %s95 = sphi 0, %s92
      %s96 = sphi 0, %s95
      %s112 = sphi 0, %s96
      %s116 = sphi 0, %s116
      %s118 = sphi 0, %s116
      %s119 = sphi 0, %s118
      %s133 = sphi 0, %s119
      %s137 = sphi 0, %s137
      %s139 = sphi 0, %s137
      %s140 = sphi 0, %s139
      %s154 = sphi 0, %s140
      %s162 = sphi 0, %s164
      %s165 = sphi 0, %s162
      %s166 = sphi 0, %s165
      %s182 = sphi 0, %s166
    $region4: #{tpu_custom_call.1} parent=1 // loop_header_branch
      %17 = sbr.rel (%p15) target = $region8
    $region5: #{tpu_custom_call.1} parent=1 // loop_body
      %s19 = ssub.s32 %s14, 1
      %s20 = ssub.s32 %s14, 2
      %s27 = sadd.s32 1, %s22
      %p28 = scmp.ge.s32.totalorder %s27, 1
      %s29 = scalar_select %p28, 0, %s27
      %s30 = sadd.s32 1, %s21
      %s31 = scalar_select %p28, %s30, %s21
      %p32 = scmp.ge.s32.totalorder %s31, 2
      %s33 = scalar_select %p32, 0, %s31
      %s34 = ssub.s32 %s21, %s33
      %s35 = ssub.s32 %s22, %s29
      %s36 = sor.u32 %s34, %s35
      %p37 = scmp.eq.s32.totalorder %s36, 0
      %s39 = sadd.s32 %s38, 1
      %s40 = scalar_select %p37, %s38, %s39
      %p43 = pneg %p37
      %p44 = scmp.eq.s32.totalorder %s14, 1
      %p45 = por %p43, %p44
      %p46 = scmp.ne.s32.totalorder %s38, %s41
      %p47 = scmp.eq.s32.totalorder %s14, 0
      %p48 = por %p46, %p47
      %p49 = scmp.ne.s32.totalorder %s38, %s41
      %p50 = scmp.eq.s32.totalorder %s19, 1
      %p51 = por %p49, %p50
      %p52 = scmp.ne.s32.totalorder %s41, %s42
      %p53 = scmp.eq.s32.totalorder %s19, 0
      %p54 = por %p52, %p53
      %p55 = scmp.ne.s32.totalorder %s41, %s42
      %p56 = scmp.eq.s32.totalorder %s20, 1
      %p57 = por %p55, %p56
      %p59 = scmp.ne.s32.totalorder %s42, %s58
      %p60 = scmp.eq.s32.totalorder %s20, 0
      %p61 = por %p59, %p60
      %s62 = ssub.s32 %s21, %s33
      %p63 = scmp.eq.s32.totalorder %s62, 0
      %s65 = sadd.s32 %s64, 1
      %s66 = scalar_select %p63, %s64, %s65
      %p69 = pneg %p63
      %p70 = scmp.eq.s32.totalorder %s14, 1
      %p71 = por %p69, %p70
      %p72 = scmp.ne.s32.totalorder %s64, %s67
      %p73 = scmp.eq.s32.totalorder %s14, 0
      %p74 = por %p72, %p73
      %p75 = scmp.ne.s32.totalorder %s64, %s67
      %p76 = scmp.eq.s32.totalorder %s19, 1
      %p77 = por %p75, %p76
      %p78 = scmp.ne.s32.totalorder %s67, %s68
      %p79 = scmp.eq.s32.totalorder %s19, 0
      %p80 = por %p78, %p79
      %p81 = scmp.ne.s32.totalorder %s67, %s68
      %p82 = scmp.eq.s32.totalorder %s20, 1
      %p83 = por %p81, %p82
      %p85 = scmp.ne.s32.totalorder %s68, %s84
      %p86 = scmp.eq.s32.totalorder %s20, 0
      %p87 = por %p85, %p86
      %s88 = ssub.s32 %s21, %s33
      %s89 = ssub.s32 %s22, %s29
      %s90 = sor.u32 %s88, %s89
      %p91 = scmp.eq.s32.totalorder %s90, 0
      %s93 = sadd.s32 %s92, 1
      %s94 = scalar_select %p91, %s92, %s93
      %p97 = pneg %p91
      %p98 = scmp.eq.s32.totalorder %s14, 1
      %p99 = por %p97, %p98
      %p100 = scmp.ne.s32.totalorder %s92, %s95
      %p101 = scmp.eq.s32.totalorder %s14, 0
      %p102 = por %p100, %p101
      %p103 = scmp.ne.s32.totalorder %s92, %s95
      %p104 = scmp.eq.s32.totalorder %s19, 1
      %p105 = por %p103, %p104
      %p106 = scmp.ne.s32.totalorder %s95, %s96
      %p107 = scmp.eq.s32.totalorder %s19, 0
      %p108 = por %p106, %p107
      %p109 = scmp.ne.s32.totalorder %s95, %s96
      %p110 = scmp.eq.s32.totalorder %s20, 1
      %p111 = por %p109, %p110
      %p113 = scmp.ne.s32.totalorder %s96, %s112
      %p114 = scmp.eq.s32.totalorder %s20, 0
      %p115 = por %p113, %p114
      %s117 = sadd.s32 %s116, 1
      %p120 = scmp.eq.s32.totalorder %s14, 1
      %p121 = scmp.ne.s32.totalorder %s116, %s118
      %p122 = scmp.eq.s32.totalorder %s14, 0
      %p123 = por %p121, %p122
      %p124 = scmp.ne.s32.totalorder %s116, %s118
      %p125 = scmp.eq.s32.totalorder %s19, 1
      %p126 = por %p124, %p125
      %p127 = scmp.ne.s32.totalorder %s118, %s119
      %p128 = scmp.eq.s32.totalorder %s19, 0
      %p129 = por %p127, %p128
      %p130 = scmp.ne.s32.totalorder %s118, %s119
      %p131 = scmp.eq.s32.totalorder %s20, 1
      %p132 = por %p130, %p131
      %p134 = scmp.ne.s32.totalorder %s119, %s133
      %p135 = scmp.eq.s32.totalorder %s20, 0
      %p136 = por %p134, %p135
      %s138 = sadd.s32 %s137, 1
      %p141 = scmp.eq.s32.totalorder %s14, 1
      %p142 = scmp.ne.s32.totalorder %s137, %s139
      %p143 = scmp.eq.s32.totalorder %s14, 0
      %p144 = por %p142, %p143
      %p145 = scmp.ne.s32.totalorder %s137, %s139
      %p146 = scmp.eq.s32.totalorder %s19, 1
      %p147 = por %p145, %p146
      %p148 = scmp.ne.s32.totalorder %s139, %s140
      %p149 = scmp.eq.s32.totalorder %s19, 0
      %p150 = por %p148, %p149
      %p151 = scmp.ne.s32.totalorder %s139, %s140
      %p152 = scmp.eq.s32.totalorder %s20, 1
      %p153 = por %p151, %p152
      %p155 = scmp.ne.s32.totalorder %s140, %s154
      %p156 = scmp.eq.s32.totalorder %s20, 0
      %p157 = por %p155, %p156
      %s158 = ssub.s32 %s21, %s33
      %s159 = ssub.s32 %s22, %s29
      %s160 = sor.u32 %s158, %s159
      %p161 = scmp.eq.s32.totalorder %s160, 0
      %s163 = sadd.s32 %s162, 1
      %s164 = scalar_select %p161, %s162, %s163
      %p167 = pneg %p161
      %p168 = scmp.eq.s32.totalorder %s14, 1
      %p169 = por %p167, %p168
      %p170 = scmp.ne.s32.totalorder %s162, %s165
      %p171 = scmp.eq.s32.totalorder %s14, 0
      %p172 = por %p170, %p171
      %p173 = scmp.ne.s32.totalorder %s162, %s165
      %p174 = scmp.eq.s32.totalorder %s19, 1
      %p175 = por %p173, %p174
      %p176 = scmp.ne.s32.totalorder %s165, %s166
      %p177 = scmp.eq.s32.totalorder %s19, 0
      %p178 = por %p176, %p177
      %p179 = scmp.ne.s32.totalorder %s165, %s166
      %p180 = scmp.eq.s32.totalorder %s20, 1
      %p181 = por %p179, %p180
      %p183 = scmp.ne.s32.totalorder %s166, %s182
      %p184 = scmp.eq.s32.totalorder %s20, 0
      %p185 = por %p183, %p184
      %p186 = scmp.le.s32.totalorder 1, %s14
      %p187 = scmp.lt.s32.totalorder %s14, 3
      %p188 = pnand %p186, %p187
      %p189 = pneg %p188
      // Predicated region
      $region9: #{tpu_custom_call.1} parent=5 // pred_check
        _
      $region10: #{tpu_custom_call.1} parent=5 // pred_check_branch
        %191 = sbr.rel (%p188) target = $region12
      $region11: #{tpu_custom_call.1} parent=5 // pred_region
        %s192 = ssub.s32 %s14, 1
        // Predicated region
        $region13: #{tpu_custom_call.1} parent=11 // pred_check
          %p193 = pneg %p129
        $region14: #{tpu_custom_call.1} parent=11 // pred_check_branch
          %195 = sbr.rel (%p193) target = $region16
        $region15: #{tpu_custom_call.1} parent=11 // pred_region
          _
        $region16: #{tpu_custom_call.1} parent=11 // pred_fallthru
          _
        // Predicated region
        $region17: #{tpu_custom_call.1} parent=11 // pred_check
          %p196 = pneg %p150
        $region18: #{tpu_custom_call.1} parent=11 // pred_check_branch
          %198 = sbr.rel (%p196) target = $region20
        $region19: #{tpu_custom_call.1} parent=11 // pred_region
          _
        $region20: #{tpu_custom_call.1} parent=11 // pred_fallthru
          _
      $region12: #{tpu_custom_call.1} parent=5 // pred_fallthru
        _
      %p199 = scmp.lt.s32.totalorder %s14, 2
      // Predicated region
      $region21: #{tpu_custom_call.1} parent=5 // pred_check
        %p200 = pneg %p199
      $region22: #{tpu_custom_call.1} parent=5 // pred_check_branch
        %202 = sbr.rel (%p200) target = $region24
      $region23: #{tpu_custom_call.1} parent=5 // pred_region
        // Predicated region
        $region25: #{tpu_custom_call.1} parent=23 // pred_check
          %p203 = pneg %p48
        $region26: #{tpu_custom_call.1} parent=23 // pred_check_branch
          %205 = sbr.rel (%p203) target = $region28
        $region27: #{tpu_custom_call.1} parent=23 // pred_region
          %s206 = smul.u32 2, %s22
          %p207 = scmp.lt.s32.totalorder %s21, 1
          %s208 = scalar_select %p207, %s21, 1
          %p209 = scmp.lt.s32.totalorder %s206, 1
          %s210 = scalar_select %p209, %s206, 1
          %s211 = smul.addr %s208, 2
          %s212 = sadd.s32 %s210, %s211
          %s213 = smul.addr %s212, 8
          %s214 = scalar_lea.vmem %s0, %s213
          %s215 = smul.u32 2, %s22
        $region28: #{tpu_custom_call.1} parent=23 // pred_fallthru
          _
        // Predicated region
        $region29: #{tpu_custom_call.1} parent=23 // pred_check
          %p216 = pneg %p74
        $region30: #{tpu_custom_call.1} parent=23 // pred_check_branch
          %218 = sbr.rel (%p216) target = $region32
        $region31: #{tpu_custom_call.1} parent=23 // pred_region
          %p219 = scmp.lt.s32.totalorder %s21, 1
          %s220 = scalar_select %p219, %s21, 1
          %s221 = smul.addr %s220, 2
          %s222 = smul.addr %s221, 8
          %s223 = scalar_lea.vmem %s1, %s222
        $region32: #{tpu_custom_call.1} parent=23 // pred_fallthru
          _
        // Predicated region
        $region33: #{tpu_custom_call.1} parent=23 // pred_check
          %p224 = pneg %p102
        $region34: #{tpu_custom_call.1} parent=23 // pred_check_branch
          %226 = sbr.rel (%p224) target = $region36
        $region35: #{tpu_custom_call.1} parent=23 // pred_region
          %s227 = smul.u32 2, %s22
          %p228 = scmp.lt.s32.totalorder %s21, 1
          %s229 = scalar_select %p228, %s21, 1
          %p230 = scmp.lt.s32.totalorder %s227, 1
          %s231 = scalar_select %p230, %s227, 1
          %s232 = smul.addr %s229, 2
          %s233 = sadd.s32 %s231, %s232
          %s234 = smul.addr %s233, 8
          %s235 = scalar_lea.vmem %s2, %s234
          %s236 = smul.u32 2, %s22
        $region36: #{tpu_custom_call.1} parent=23 // pred_fallthru
          _
      $region24: #{tpu_custom_call.1} parent=5 // pred_fallthru
        _
      %p237 = scmp.le.s32.totalorder 1, %s14
      %p238 = scmp.lt.s32.totalorder %s14, 3
      %p239 = pnand %p237, %p238
      %p240 = pneg %p239
      // Predicated region
      $region37: #{tpu_custom_call.1} parent=5 // pred_check
        _
      $region38: #{tpu_custom_call.1} parent=5 // pred_check_branch
        %242 = sbr.rel (%p239) target = $region40
      $region39: #{tpu_custom_call.1} parent=5 // pred_region
        %s243 = ssub.s32 %s14, 1
        %s244 = smul.u32 2, %s24
        %p245 = scmp.lt.s32.totalorder %s23, 1
        %s246 = scalar_select %p245, %s23, 1
        %p247 = scmp.lt.s32.totalorder %s244, 1
        %s248 = scalar_select %p247, %s244, 1
        %s249 = smul.addr %s246, 2
        %s250 = sadd.s32 %s248, %s249
        %s251 = smul.addr %s250, 8
        %s252 = scalar_lea.vmem %s0, %s251
        %p253 = pneg %p54
        %p254 = pneg %p51
        %p255 = scmp.lt.s32.totalorder %s23, 1
        %s256 = scalar_select %p255, %s23, 1
        %s257 = smul.addr %s256, 2
        %s258 = smul.addr %s257, 8
        %s259 = scalar_lea.vmem %s1, %s258
        %p260 = pneg %p80
        %p261 = pneg %p77
        %s262 = smul.u32 2, %s24
        %p263 = scmp.lt.s32.totalorder %s23, 1
        %s264 = scalar_select %p263, %s23, 1
        %p265 = scmp.lt.s32.totalorder %s262, 1
        %s266 = scalar_select %p265, %s262, 1
        %s267 = smul.addr %s264, 2
        %s268 = sadd.s32 %s266, %s267
        %s269 = smul.addr %s268, 8
        %s270 = scalar_lea.vmem %s2, %s269
        %p271 = pneg %p108
        %p272 = pneg %p105
        %p273 = pneg %p129
        %p274 = pneg %p126
        %p275 = pneg %p150
        %p276 = pneg %p147
        %p277 = pneg %p178
        %p278 = pneg %p175
        %s279 = sand.u32 %s165, 1
        %s280 = scalar_lea.sflag [#allocation3], %s279
        %s281 = sand.u32 %s165, 1
        %s282 = smul.addr %s281, 16
        %s283 = scalar_lea.vmem [#allocation2], %s282
        %s284 = smul.u32 2, %s24
        %p285 = scmp.lt.s32.totalorder %s23, 1
        %s286 = scalar_select %p285, %s23, 1
        %p287 = scmp.lt.s32.totalorder %s284, 1
        %s288 = scalar_select %p287, %s284, 1
        %s289 = smul.addr %s286, 2
        %s290 = sadd.s32 %s288, %s289
        %s291 = smul.addr %s290, 8
        %s292 = scalar_lea.vmem %s0, %s291
        %s293 = smul.u32 2, %s24
        %p294 = scmp.lt.s32.totalorder %s23, 1
        %s295 = scalar_select %p294, %s23, 1
        %s296 = smul.addr %s295, 2
        %s297 = smul.addr %s296, 8
        %s298 = scalar_lea.vmem %s1, %s297
        %s299 = smul.u32 2, %s24
        %p300 = scmp.lt.s32.totalorder %s23, 1
        %s301 = scalar_select %p300, %s23, 1
        %p302 = scmp.lt.s32.totalorder %s299, 1
        %s303 = scalar_select %p302, %s299, 1
        %s304 = smul.addr %s301, 2
        %s305 = sadd.s32 %s303, %s304
        %s306 = smul.addr %s305, 8
        %s307 = scalar_lea.vmem %s2, %s306
        %s308 = smul.u32 2, %s24
        %s309 = smul.u32 2, %s24
        %v310 = vld [vmem:[%s292] sm:$0xff]
        %v311 = vld [vmem:[%s292 + $0x8] sm:$0xff]
        %v312 = vld [vmem:[%s298] sm:$0xff]
        %v313 = vld [vmem:[%s298 + $0x8] sm:$0xff]
        %vm314 = vcmask 130048
        %v316 = vsel %vm314, %v310, 0
        %v319 = vsel %vm314, %v311, 0
        %321 = vmatpush.msra.mxu0 0.0
        %322 = vmatpush.msra.mxu0 0.0
        %323 = vmatpush.msra.mxu0 0.0
        %324 = vmatpush.msra.mxu0 0.0
        %325 = vmatpush.msra.mxu0 0.0
        %326 = vmatpush.msra.mxu0 0.0
        %327 = vmatpush.msra.mxu0 0.0
        %328 = vmatpush.msra.mxu0 0.0
        %329 = vmatpush.msra.mxu0 0.0
        %330 = vmatpush.msra.mxu0 0.0
        %331 = vmatpush.msra.mxu0 0.0
        %332 = vmatpush.msra.mxu0 0.0
        %333 = vmatpush.msra.mxu0 0.0
        %334 = vmatpush.msra.mxu0 0.0
        %335 = vmatpush.msra.mxu0 %v313
        %336 = vmatpush.msra.mxu0 %v312
        %337 = vmatmul.f32.gmra.mxu0 %v316
        %v338 = vpop.f32.mrf.mxu0
        %v339 = vadd.f32 0.0, %v338
        %340 = vmatmul.f32.gmra.mxu0 %v319
        %v341 = vpop.f32.mrf.mxu0
        %v342 = vadd.f32 0.0, %v341
        %343 = vdwg.mxu0
        %v344 = vld [vmem:[%s307] sm:$0xff]
        %v345 = vld [vmem:[%s307 + $0x8] sm:$0xff]
        %347 = vset.pattern.permute.xlu0 0
        %348 = vperm.xlu0 %347, %v344
        %v349 = vpop.permute.xlu0 %348
        %352 = vset.pattern.permute.xlu0 0
        %353 = vperm.xlu0 %352, %v345
        %v354 = vpop.permute.xlu0 %353
        %v356 = vmul.f32 %v349, %v339
        %v357 = vmul.f32 %v354, %v342
        %v358 = vld [vmem:[%s3] sm:$0xff]
        %v359 = vld [vmem:[%s4] sm:$0x1]
        %v361 = vperm.slane %v359, 0
        %vm363 = vcmask 64512
        %v365 = vsel %vm363, %v356, 0
        %v368 = vsel %vm363, %v357, 0
        %370 = vmatpush.msra.mxu0 0.0
        %371 = vmatpush.msra.mxu0 0.0
        %372 = vmatpush.msra.mxu0 0.0
        %373 = vmatpush.msra.mxu0 0.0
        %374 = vmatpush.msra.mxu0 0.0
        %375 = vmatpush.msra.mxu0 0.0
        %376 = vmatpush.msra.mxu0 0.0
        %377 = vmatpush.msra.mxu0 0.0
        %378 = vmatpush.msra.mxu0 0.0
        %379 = vmatpush.msra.mxu0 0.0
        %380 = vmatpush.msra.mxu0 0.0
        %381 = vmatpush.msra.mxu0 0.0
        %382 = vmatpush.msra.mxu0 0.0
        %383 = vmatpush.msra.mxu0 0.0
        %384 = vmatpush.msra.mxu0 0.0
        %385 = vmatpush.msra.mxu0 %v358
        %386 = vmatmul.f32.gmra.mxu0 %v365
        %v387 = vpop.f32.mrf.mxu0
        %v388 = vadd.f32 %v361, %v387
        %389 = vmatmul.f32.gmra.mxu0 %v368
        %v390 = vpop.f32.mrf.mxu0
        %v391 = vadd.f32 %v361, %v390
        %392 = vdwg.mxu0
        %393 = vst [vmem:[%s283] sm:$0xff] %v388
        %394 = vst [vmem:[%s283 + $0x8] sm:$0xff] %v391
        %s395 = sand.u32 %s165, 1
        %s396 = scalar_lea.sflag [#allocation3], %s395
        %s397 = sand.u32 %s165, 1
        %s398 = smul.addr %s397, 16
        %s399 = scalar_lea.vmem [#allocation2], %s398
        // Predicated region
        $region41: #{tpu_custom_call.1} parent=39 // pred_check
          %p400 = pneg %p175
        $region42: #{tpu_custom_call.1} parent=39 // pred_check_branch
          %402 = sbr.rel (%p400) target = $region44
        $region43: #{tpu_custom_call.1} parent=39 // pred_region
          %s403 = smul.u32 2, %s24
          %405 = vsyncadd %s396, 0
          %s406 = smul.addr %s23, 2
          %s407 = sadd.s32 %s403, %s406
          %s408 = smul.addr %s407, 8
          %s409 = scalar_lea.hbm %s5, %s408
          %s410 = sshll.u32 %s399, 4
          %s411 = int_to_ptr.vmem [resolvable:$true] %s410
          %s412 = sshll.u32 %s409, 4
          %s413 = int_to_ptr.hbm [resolvable:$true] %s412
          %418 = dma.vmem_to_hbm [thread:$0]  %s411, 256, %s413, %s396, 128, 128, 8
        $region44: #{tpu_custom_call.1} parent=39 // pred_fallthru
          _
      $region40: #{tpu_custom_call.1} parent=5 // pred_fallthru
        _
      %p419 = scmp.le.s32.totalorder 2, %s14
      // Predicated region
      $region45: #{tpu_custom_call.1} parent=5 // pred_check
        %p420 = pneg %p419
      $region46: #{tpu_custom_call.1} parent=5 // pred_check_branch
        %422 = sbr.rel (%p420) target = $region48
      $region47: #{tpu_custom_call.1} parent=5 // pred_region
        %s423 = ssub.s32 %s14, 2
        // Predicated region
        $region49: #{tpu_custom_call.1} parent=47 // pred_check
          %p424 = pneg %p181
        $region50: #{tpu_custom_call.1} parent=47 // pred_check_branch
          %426 = sbr.rel (%p424) target = $region52
        $region51: #{tpu_custom_call.1} parent=47 // pred_region
          %s427 = sand.u32 %s166, 1
          %s428 = scalar_lea.sflag [#allocation3], %s427
          %s429 = sand.u32 %s166, 1
          %s430 = smul.addr %s429, 16
          %s431 = scalar_lea.vmem [#allocation2], %s430
          %433 = dma.done %s428, 256
        $region52: #{tpu_custom_call.1} parent=47 // pred_fallthru
          _
      $region48: #{tpu_custom_call.1} parent=5 // pred_fallthru
        _
    $region6: #{tpu_custom_call.1} parent=1 // loop_footer
      %s18 = sadd.s32 1, %s14
    $region7: #{tpu_custom_call.1} parent=1 // loop_footer_branch
      %13 = sbr.rel target = $region3
    $region8: #{tpu_custom_call.1} parent=1 // loop_exit
      _
    %434 = vsyncpa [#allocation3], 1
    %s435 = scalar_lea.sflag [#allocation3], 1
    %436 = vsyncpa %s435, 1

</llo_original>
